<compile_context>
chip_gen: v6e
topology: v6e:2x2x1
jax: 0.10.0
libtpu: 0.0.40
codegen_flags: <defaults>
</compile_context>

<pallas_src>
import functools

import jax
import jax.numpy as jnp
from jax.experimental import pallas as pl
from jax.experimental.pallas import tpu as pltpu


def _yolo_loss_kernel(pred_ref, tgt_ref, out_ref, *, inv_s, sub_per_blk):
    # pred_ref: (sub_per_blk, 30, 8, 128)  native dtype (f32 or bf16)
    #           channels: 0:5 box0 (x,y,w,h,c), 5:10 box1, 10:30 classes
    # tgt_ref : (sub_per_blk, 25, 8, 128)  f32
    #           channels: 0:4 target box, 4:24 target classes, 24 object mask
    # out_ref : (1, 4, 8, 128) f32 per-block per-lane partial sums
    #           rows: [cls, noobj, reg, contain]
    out_ref[...] = jnp.zeros_like(out_ref)

    @pl.loop(0, sub_per_blk)
    def _(j):
        pb = pred_ref[j, 0:10].astype(jnp.float32)    # (10, 8, 128) boxes
        pc = pred_ref[j, 10:30].astype(jnp.float32)   # (20, 8, 128) classes
        tb = tgt_ref[j, 0:4]                          # (4, 8, 128) target box
        tc = tgt_ref[j, 4:24]                         # (20, 8, 128) target cls
        obj = tgt_ref[j, 24]                          # (8, 128) {0,1}; pad = 0
        noobj = 1.0 - obj

        # ---- classification loss (object cells only) ----
        cd = pc - tc
        cls_p = jnp.sum(cd * cd, axis=0) * obj

        # ---- no-object confidence loss (both predicted boxes) ----
        n0 = pb[4] * noobj
        n1 = pb[9] * noobj
        noobj_p = n0 * n0 + n1 * n1

        # ---- IoU of each predicted box vs. target (slab corner math) ----
        def corners(b4):                              # b4: (4,8,128) x,y,w,h
            cxy = b4[0:2] * inv_s
            half = 0.5 * b4[2:4]
            return cxy - half, cxy + half             # mins, maxs (2,8,128)

        tmin, tmax = corners(tb)
        twh = tmax - tmin
        t_area = twh[0] * twh[1]

        def iou(b4):
            bmin, bmax = corners(b4)
            lt = jnp.maximum(bmin, tmin)
            rb = jnp.minimum(bmax, tmax)
            wh = jnp.maximum(rb - lt, 0.0)
            inter = wh[0] * wh[1]
            bwh = bmax - bmin
            area = bwh[0] * bwh[1]
            union = area + t_area - inter + 1e-12     # eps: no 0/0 on padding
            # EUP reciprocal seed, refined by two Newton steps on the VPU
            r = pl.reciprocal(union, approx=True)
            r = r * (2.0 - union * r)
            r = r * (2.0 - union * r)
            return inter * r

        iou0 = iou(pb[0:4])
        iou1 = iou(pb[5:9])

        # ---- best box per cell: slab select + slab regression ----
        sel = (iou0 - iou1) > 0.0                     # (8, 128) bool
        best_iou = jnp.where(sel, iou0, iou1)
        best = jnp.where(sel[None], pb[0:5], pb[5:10])  # (5, 8, 128)
        d = best[0:4] - tb
        reg_p = obj * jnp.sum(d * d, axis=0)
        dcf = best[4] - best_iou
        contain_p = obj * (dcf * dcf)

        # ---- per-lane accumulation into this block's output tile ----
        out_ref[0, 0] += cls_p
        out_ref[0, 1] += noobj_p
        out_ref[0, 2] += reg_p
        out_ref[0, 3] += contain_p


def _yolo_loss_forward(pred_tensor, target_boxes, target_cls, has_object_map,
                       *, S, l_coord, l_noobj, batch_size):
    N, S_, _, C = pred_tensor.shape
    assert C == 30, "kernel assumes B == 2 and 20 classes (C == 30)"
    M = N * S_ * S_

    SUB_CELLS = 8 * 128          # one (8, 128) vreg tile of cells
    MAX_SUB_PER_BLK = 16         # <= 16K cells / ~5 MB per block (f32)

    n_sub = -(-M // SUB_CELLS)
    nb = -(-n_sub // MAX_SUB_PER_BLK)
    sub_per_blk = -(-n_sub // nb)
    n_sub_pad = nb * sub_per_blk
    m_pad = n_sub_pad * SUB_CELLS

    # Predictions keep their native dtype (bf16 stays bf16 -> half the HBM
    # traffic); targets + mask always travel in f32 for accuracy.
    if pred_tensor.dtype in (jnp.float32, jnp.bfloat16):
        pred_dt = pred_tensor.dtype
    else:
        pred_dt = jnp.float32

    pred_p = pred_tensor.reshape(M, C).astype(pred_dt)               # (M, 30)
    tgt_p = jnp.concatenate(
        [
            target_boxes.reshape(M, 4).astype(jnp.float32),
            target_cls.reshape(M, 20).astype(jnp.float32),
            has_object_map.reshape(M, 1).astype(jnp.float32),
        ],
        axis=-1,
    )                                                                # (M, 25)

    if m_pad != M:
        # padded cells: obj = 0, conf = 0 -> contribute exactly 0 everywhere
        pred_p = jnp.pad(pred_p, ((0, m_pad - M), (0, 0)))
        tgt_p = jnp.pad(tgt_p, ((0, m_pad - M), (0, 0)))

    # (sub, channel, 8, 128): channel-major per sub-chunk, (8,128)-aligned
    pred_p = pred_p.reshape(n_sub_pad, 8, 128, C).transpose(0, 3, 1, 2)
    tgt_p = tgt_p.reshape(n_sub_pad, 8, 128, 25).transpose(0, 3, 1, 2)

    kernel = functools.partial(_yolo_loss_kernel, inv_s=1.0 / float(S),
                               sub_per_blk=sub_per_blk)
    partials = pl.pallas_call(
        kernel,
        out_shape=jax.ShapeDtypeStruct((nb, 4, 8, 128), jnp.float32),
        grid=(nb,),
        in_specs=[
            pl.BlockSpec((sub_per_blk, C, 8, 128), lambda i: (i, 0, 0, 0)),
            pl.BlockSpec((sub_per_blk, 25, 8, 128), lambda i: (i, 0, 0, 0)),
        ],
        out_specs=pl.BlockSpec((1, 4, 8, 128), lambda i: (i, 0, 0, 0)),
        compiler_params=pltpu.CompilerParams(
            dimension_semantics=("parallel",)),
    )(pred_p, tgt_p)

    sums = jnp.sum(partials, axis=(0, 2, 3))        # tiny XLA reduction -> (4,)
    cls_loss, noobj_loss, reg_loss, contain_loss = (
        sums[0], sums[1], sums[2], sums[3])
    total = (cls_loss + l_noobj * noobj_loss
             + l_coord * reg_loss + contain_loss)
    bs = batch_size
    return dict(
        total_loss=total / bs,
        reg_loss=reg_loss / bs,
        containing_obj_loss=contain_loss / bs,
        no_obj_loss=noobj_loss / bs,
        cls_loss=cls_loss / bs,
    )


class YoloLoss:
    """JAX/Pallas reimplementation of the PyTorch YoloLoss forward pass."""

    def __init__(self, S, B, l_coord, l_noobj, batch_size):
        assert B == 2, "kernel assumes B == 2 (as in the original module)"
        self.S = S
        self.B = B
        self.l_coord = l_coord
        self.l_noobj = l_noobj
        self.batch_size = batch_size
        self._forward = jax.jit(functools.partial(
            _yolo_loss_forward, S=S, l_coord=float(l_coord),
            l_noobj=float(l_noobj), batch_size=batch_size))

    def __call__(self, pred_tensor, target_boxes, target_cls, has_object_map):
        return self._forward(pred_tensor, target_boxes, target_cls,
                             has_object_map)


def _reference(pred, tbox, tcls, obj, S, l_coord, l_noobj, bs):
    """Pure-JAX reference mirroring the PyTorch module semantics."""
    obj_f = obj.astype(jnp.float32)
    cls_loss = jnp.sum((pred[..., 10:] - tcls) ** 2 * obj_f[..., None])
    noobj_f = 1.0 - obj_f
    noobj_loss = (jnp.sum((pred[..., 4] * noobj_f) ** 2)
                  + jnp.sum((pred[..., 9] * noobj_f) ** 2))

    def to_xyxy(b):
        x, y, w, h = b[..., 0], b[..., 1], b[..., 2], b[..., 3]
        return jnp.stack([x / S - 0.5 * w, y / S - 0.5 * h,
                          x / S + 0.5 * w, y / S + 0.5 * h], axis=-1)

    def iou(b1, b2):
        lt = jnp.maximum(b1[..., :2], b2[..., :2])
        rb = jnp.minimum(b1[..., 2:], b2[..., 2:])
        wh = jnp.maximum(rb - lt, 0.0)
        inter = wh[..., 0] * wh[..., 1]
        a1 = (b1[..., 2] - b1[..., 0]) * (b1[..., 3] - b1[..., 1])
        a2 = (b2[..., 2] - b2[..., 0]) * (b2[..., 3] - b2[..., 1])
        return inter / (a1 + a2 - inter)

    box0 = pred[..., 0:5]
    box1 = pred[..., 5:10]
    t_xyxy = to_xyxy(tbox)
    iou0 = iou(to_xyxy(box0[..., :4]), t_xyxy)
    iou1 = iou(to_xyxy(box1[..., :4]), t_xyxy)
    sel = (iou0 - iou1) > 0
    best_iou = jnp.where(sel, iou0, iou1)
    best_box = jnp.where(sel[..., None], box0, box1)
    reg = jnp.sum((best_box[..., :4] - tbox) ** 2, axis=-1)
    reg_loss = jnp.sum(jnp.where(obj, reg, 0.0))
    contain_loss = jnp.sum(jnp.where(obj, (best_box[..., 4] - best_iou) ** 2, 0.0))
    total = cls_loss + l_noobj * noobj_loss + l_coord * reg_loss + contain_loss
    return dict(total_loss=total / bs, reg_loss=reg_loss / bs,
                containing_obj_loss=contain_loss / bs,
                no_obj_loss=noobj_loss / bs, cls_loss=cls_loss / bs)


if __name__ == "__main__":
    key = jax.random.PRNGKey(0)
    N, S, B = 2, 8, 2
    l_coord, l_noobj = 5.0, 0.5
    k1, k2, k3, k4 = jax.random.split(key, 4)

    pred_tensor = jax.random.uniform(k1, (N, S, S, B * 5 + 20), dtype=jnp.float32)
    target_boxes = jax.random.uniform(k2, (N, S, S, 4), dtype=jnp.float32)
    target_cls = jax.random.uniform(k3, (N, S, S, 20), dtype=jnp.float32)
    has_object_map = jax.random.uniform(k4, (N, S, S)) > 0.5

    loss_fn = YoloLoss(S=S, B=B, l_coord=l_coord, l_noobj=l_noobj, batch_size=N)
    out = loss_fn(pred_tensor, target_boxes, target_cls, has_object_map)
    jax.block_until_ready(out)

    ref = _reference(pred_tensor, target_boxes, target_cls, has_object_map,
                     S, l_coord, l_noobj, N)
    for k in out:
        assert jnp.allclose(out[k], ref[k], rtol=1e-4, atol=1e-4), (
            k, out[k], ref[k])

    print("KERNEL_OK")
</pallas_src>

<mosaic_0001>
module attributes {stable_mosaic.version = 11 : i64} {
  func.func @_yolo_loss_kernel(%arg0: i32, %arg1: memref<1x30x8x128xf32, #tpu.memory_space<vmem>>, %arg2: memref<1x25x8x128xf32, #tpu.memory_space<vmem>>, %arg3: memref<1x4x8x128xf32, #tpu.memory_space<vmem>>) attributes {dimension_semantics = [#tpu.dimension_semantics<parallel>], iteration_bounds = array<i64: 1>, scalar_prefetch = 0 : i64, scratch_operands = 0 : i64, tpu.core_type = #tpu.core_type<tc>, window_params = [{transform_indices = @transform_0, window_bounds = array<i64: 1, 30, 8, 128>}, {transform_indices = @transform_1, window_bounds = array<i64: 1, 25, 8, 128>}, {transform_indices = @transform_2, window_bounds = array<i64: 1, 4, 8, 128>}]} {
    %cst = arith.constant 0.000000e+00 : f32
    %0 = vector.broadcast %cst : f32 to vector<1x4x8x128xf32>
    %c0 = arith.constant 0 : index
    %c0_0 = arith.constant 0 : index
    %c0_1 = arith.constant 0 : index
    %c0_2 = arith.constant 0 : index
    %1 = vector.load %arg3[%c0, %c0_0, %c0_1, %c0_2] : memref<1x4x8x128xf32, #tpu.memory_space<vmem>>, vector<1x4x8x128xf32>
    tpu.vector_store %arg3[%c0, %c0_0, %c0_1, %c0_2], %0 {strides = array<i32>} : memref<1x4x8x128xf32, #tpu.memory_space<vmem>>, vector<1x4x8x128xf32>,
    %c0_i32 = arith.constant 0 : i32
    %c1_i32 = arith.constant 1 : i32
    %2 = arith.muli %c0_i32, %c1_i32 : i32
    %c0_i32_3 = arith.constant 0 : i32
    %3 = arith.addi %c0_i32_3, %2 : i32
    %4 = arith.index_cast %3 : i32 to index
    %c0_4 = arith.constant 0 : index
    %c0_5 = arith.constant 0 : index
    %c0_6 = arith.constant 0 : index
    %5 = vector.load %arg1[%4, %c0_4, %c0_5, %c0_6] : memref<1x30x8x128xf32, #tpu.memory_space<vmem>>, vector<1x10x8x128xf32>
    %6 = vector.shape_cast %5 : vector<1x10x8x128xf32> to vector<10x8x128xf32>
    %7 = arith.index_cast %3 : i32 to index
    %c10 = arith.constant 10 : index
    %c0_7 = arith.constant 0 : index
    %c0_8 = arith.constant 0 : index
    %8 = vector.load %arg1[%7, %c10, %c0_7, %c0_8] : memref<1x30x8x128xf32, #tpu.memory_space<vmem>>, vector<1x20x8x128xf32>
    %9 = vector.shape_cast %8 : vector<1x20x8x128xf32> to vector<20x8x128xf32>
    %10 = arith.index_cast %3 : i32 to index
    %c0_9 = arith.constant 0 : index
    %c0_10 = arith.constant 0 : index
    %c0_11 = arith.constant 0 : index
    %11 = vector.load %arg2[%10, %c0_9, %c0_10, %c0_11] : memref<1x25x8x128xf32, #tpu.memory_space<vmem>>, vector<1x4x8x128xf32>
    %12 = vector.shape_cast %11 : vector<1x4x8x128xf32> to vector<4x8x128xf32>
    %13 = arith.index_cast %3 : i32 to index
    %c4 = arith.constant 4 : index
    %c0_12 = arith.constant 0 : index
    %c0_13 = arith.constant 0 : index
    %14 = vector.load %arg2[%13, %c4, %c0_12, %c0_13] : memref<1x25x8x128xf32, #tpu.memory_space<vmem>>, vector<1x20x8x128xf32>
    %15 = vector.shape_cast %14 : vector<1x20x8x128xf32> to vector<20x8x128xf32>
    %16 = arith.index_cast %3 : i32 to index
    %c24 = arith.constant 24 : index
    %c0_14 = arith.constant 0 : index
    %c0_15 = arith.constant 0 : index
    %17 = vector.load %arg2[%16, %c24, %c0_14, %c0_15] : memref<1x25x8x128xf32, #tpu.memory_space<vmem>>, vector<1x1x8x128xf32>
    %18 = vector.shape_cast %17 : vector<1x1x8x128xf32> to vector<8x128xf32>
    %cst_16 = arith.constant 1.000000e+00 : f32
    %19 = vector.broadcast %cst_16 : f32 to vector<8x128xf32>
    %20 = arith.subf %19, %18 : vector<8x128xf32>
    %21 = arith.subf %9, %15 : vector<20x8x128xf32>
    %22 = arith.mulf %21, %21 : vector<20x8x128xf32>
    %cst_17 = arith.constant dense<0.000000e+00> : vector<8x128xf32>
    %23 = vector.multi_reduction <add>, %22, %cst_17 [0] : vector<20x8x128xf32> to vector<8x128xf32>
    %24 = arith.mulf %23, %18 : vector<8x128xf32>
    %25 = vector.extract_strided_slice %6 {offsets = [4, 0, 0], sizes = [1, 8, 128], strides = [1, 1, 1]} : vector<10x8x128xf32> to vector<1x8x128xf32>
    %26 = vector.shape_cast %25 : vector<1x8x128xf32> to vector<8x128xf32>
    %27 = arith.mulf %26, %20 : vector<8x128xf32>
    %28 = vector.extract_strided_slice %6 {offsets = [9, 0, 0], sizes = [1, 8, 128], strides = [1, 1, 1]} : vector<10x8x128xf32> to vector<1x8x128xf32>
    %29 = vector.shape_cast %28 : vector<1x8x128xf32> to vector<8x128xf32>
    %30 = arith.mulf %29, %20 : vector<8x128xf32>
    %31 = arith.mulf %27, %27 : vector<8x128xf32>
    %32 = arith.mulf %30, %30 : vector<8x128xf32>
    %33 = arith.addf %31, %32 : vector<8x128xf32>
    %34 = vector.extract_strided_slice %12 {offsets = [0, 0, 0], sizes = [2, 8, 128], strides = [1, 1, 1]} : vector<4x8x128xf32> to vector<2x8x128xf32>
    %cst_18 = arith.constant 1.250000e-01 : f32
    %35 = vector.broadcast %cst_18 : f32 to vector<2x8x128xf32>
    %36 = arith.mulf %34, %35 : vector<2x8x128xf32>
    %37 = vector.extract_strided_slice %12 {offsets = [2, 0, 0], sizes = [2, 8, 128], strides = [1, 1, 1]} : vector<4x8x128xf32> to vector<2x8x128xf32>
    %cst_19 = arith.constant 5.000000e-01 : f32
    %38 = vector.broadcast %cst_19 : f32 to vector<2x8x128xf32>
    %39 = arith.mulf %38, %37 : vector<2x8x128xf32>
    %40 = arith.subf %36, %39 : vector<2x8x128xf32>
    %41 = arith.addf %36, %39 : vector<2x8x128xf32>
    %42 = arith.subf %41, %40 : vector<2x8x128xf32>
    %43 = vector.extract_strided_slice %42 {offsets = [0, 0, 0], sizes = [1, 8, 128], strides = [1, 1, 1]} : vector<2x8x128xf32> to vector<1x8x128xf32>
    %44 = vector.shape_cast %43 : vector<1x8x128xf32> to vector<8x128xf32>
    %45 = vector.extract_strided_slice %42 {offsets = [1, 0, 0], sizes = [1, 8, 128], strides = [1, 1, 1]} : vector<2x8x128xf32> to vector<1x8x128xf32>
    %46 = vector.shape_cast %45 : vector<1x8x128xf32> to vector<8x128xf32>
    %47 = arith.mulf %44, %46 : vector<8x128xf32>
    %48 = vector.extract_strided_slice %6 {offsets = [0, 0, 0], sizes = [4, 8, 128], strides = [1, 1, 1]} : vector<10x8x128xf32> to vector<4x8x128xf32>
    %49 = vector.extract_strided_slice %48 {offsets = [0, 0, 0], sizes = [2, 8, 128], strides = [1, 1, 1]} : vector<4x8x128xf32> to vector<2x8x128xf32>
    %cst_20 = arith.constant 1.250000e-01 : f32
    %50 = vector.broadcast %cst_20 : f32 to vector<2x8x128xf32>
    %51 = arith.mulf %49, %50 : vector<2x8x128xf32>
    %52 = vector.extract_strided_slice %48 {offsets = [2, 0, 0], sizes = [2, 8, 128], strides = [1, 1, 1]} : vector<4x8x128xf32> to vector<2x8x128xf32>
    %cst_21 = arith.constant 5.000000e-01 : f32
    %53 = vector.broadcast %cst_21 : f32 to vector<2x8x128xf32>
    %54 = arith.mulf %53, %52 : vector<2x8x128xf32>
    %55 = arith.subf %51, %54 : vector<2x8x128xf32>
    %56 = arith.addf %51, %54 : vector<2x8x128xf32>
    %57 = arith.maximumf %55, %40 : vector<2x8x128xf32>
    %58 = arith.minimumf %56, %41 : vector<2x8x128xf32>
    %59 = arith.subf %58, %57 : vector<2x8x128xf32>
    %cst_22 = arith.constant 0.000000e+00 : f32
    %60 = vector.broadcast %cst_22 : f32 to vector<2x8x128xf32>
    %61 = arith.maximumf %59, %60 : vector<2x8x128xf32>
    %62 = vector.extract_strided_slice %61 {offsets = [0, 0, 0], sizes = [1, 8, 128], strides = [1, 1, 1]} : vector<2x8x128xf32> to vector<1x8x128xf32>
    %63 = vector.shape_cast %62 : vector<1x8x128xf32> to vector<8x128xf32>
    %64 = vector.extract_strided_slice %61 {offsets = [1, 0, 0], sizes = [1, 8, 128], strides = [1, 1, 1]} : vector<2x8x128xf32> to vector<1x8x128xf32>
    %65 = vector.shape_cast %64 : vector<1x8x128xf32> to vector<8x128xf32>
    %66 = arith.mulf %63, %65 : vector<8x128xf32>
    %67 = arith.subf %56, %55 : vector<2x8x128xf32>
    %68 = vector.extract_strided_slice %67 {offsets = [0, 0, 0], sizes = [1, 8, 128], strides = [1, 1, 1]} : vector<2x8x128xf32> to vector<1x8x128xf32>
    %69 = vector.shape_cast %68 : vector<1x8x128xf32> to vector<8x128xf32>
    %70 = vector.extract_strided_slice %67 {offsets = [1, 0, 0], sizes = [1, 8, 128], strides = [1, 1, 1]} : vector<2x8x128xf32> to vector<1x8x128xf32>
    %71 = vector.shape_cast %70 : vector<1x8x128xf32> to vector<8x128xf32>
    %72 = arith.mulf %69, %71 : vector<8x128xf32>
    %73 = arith.addf %72, %47 : vector<8x128xf32>
    %74 = arith.subf %73, %66 : vector<8x128xf32>
    %cst_23 = arith.constant 9.99999996E-13 : f32
    %75 = vector.broadcast %cst_23 : f32 to vector<8x128xf32>
    %76 = arith.addf %74, %75 : vector<8x128xf32>
    %77 = tpu.reciprocal %76 {approx = true} : vector<8x128xf32> -> vector<8x128xf32>
    %78 = arith.mulf %76, %77 : vector<8x128xf32>
    %cst_24 = arith.constant 2.000000e+00 : f32
    %79 = vector.broadcast %cst_24 : f32 to vector<8x128xf32>
    %80 = arith.subf %79, %78 : vector<8x128xf32>
    %81 = arith.mulf %77, %80 : vector<8x128xf32>
    %82 = arith.mulf %76, %81 : vector<8x128xf32>
    %cst_25 = arith.constant 2.000000e+00 : f32
    %83 = vector.broadcast %cst_25 : f32 to vector<8x128xf32>
    %84 = arith.subf %83, %82 : vector<8x128xf32>
    %85 = arith.mulf %81, %84 : vector<8x128xf32>
    %86 = arith.mulf %66, %85 : vector<8x128xf32>
    %87 = vector.extract_strided_slice %6 {offsets = [5, 0, 0], sizes = [4, 8, 128], strides = [1, 1, 1]} : vector<10x8x128xf32> to vector<4x8x128xf32>
    %88 = vector.extract_strided_slice %87 {offsets = [0, 0, 0], sizes = [2, 8, 128], strides = [1, 1, 1]} : vector<4x8x128xf32> to vector<2x8x128xf32>
    %cst_26 = arith.constant 1.250000e-01 : f32
    %89 = vector.broadcast %cst_26 : f32 to vector<2x8x128xf32>
    %90 = arith.mulf %88, %89 : vector<2x8x128xf32>
    %91 = vector.extract_strided_slice %87 {offsets = [2, 0, 0], sizes = [2, 8, 128], strides = [1, 1, 1]} : vector<4x8x128xf32> to vector<2x8x128xf32>
    %cst_27 = arith.constant 5.000000e-01 : f32
    %92 = vector.broadcast %cst_27 : f32 to vector<2x8x128xf32>
    %93 = arith.mulf %92, %91 : vector<2x8x128xf32>
    %94 = arith.subf %90, %93 : vector<2x8x128xf32>
    %95 = arith.addf %90, %93 : vector<2x8x128xf32>
    %96 = arith.maximumf %94, %40 : vector<2x8x128xf32>
    %97 = arith.minimumf %95, %41 : vector<2x8x128xf32>
    %98 = arith.subf %97, %96 : vector<2x8x128xf32>
    %cst_28 = arith.constant 0.000000e+00 : f32
    %99 = vector.broadcast %cst_28 : f32 to vector<2x8x128xf32>
    %100 = arith.maximumf %98, %99 : vector<2x8x128xf32>
    %101 = vector.extract_strided_slice %100 {offsets = [0, 0, 0], sizes = [1, 8, 128], strides = [1, 1, 1]} : vector<2x8x128xf32> to vector<1x8x128xf32>
    %102 = vector.shape_cast %101 : vector<1x8x128xf32> to vector<8x128xf32>
    %103 = vector.extract_strided_slice %100 {offsets = [1, 0, 0], sizes = [1, 8, 128], strides = [1, 1, 1]} : vector<2x8x128xf32> to vector<1x8x128xf32>
    %104 = vector.shape_cast %103 : vector<1x8x128xf32> to vector<8x128xf32>
    %105 = arith.mulf %102, %104 : vector<8x128xf32>
    %106 = arith.subf %95, %94 : vector<2x8x128xf32>
    %107 = vector.extract_strided_slice %106 {offsets = [0, 0, 0], sizes = [1, 8, 128], strides = [1, 1, 1]} : vector<2x8x128xf32> to vector<1x8x128xf32>
    %108 = vector.shape_cast %107 : vector<1x8x128xf32> to vector<8x128xf32>
    %109 = vector.extract_strided_slice %106 {offsets = [1, 0, 0], sizes = [1, 8, 128], strides = [1, 1, 1]} : vector<2x8x128xf32> to vector<1x8x128xf32>
    %110 = vector.shape_cast %109 : vector<1x8x128xf32> to vector<8x128xf32>
    %111 = arith.mulf %108, %110 : vector<8x128xf32>
    %112 = arith.addf %111, %47 : vector<8x128xf32>
    %113 = arith.subf %112, %105 : vector<8x128xf32>
    %cst_29 = arith.constant 9.99999996E-13 : f32
    %114 = vector.broadcast %cst_29 : f32 to vector<8x128xf32>
    %115 = arith.addf %113, %114 : vector<8x128xf32>
    %116 = tpu.reciprocal %115 {approx = true} : vector<8x128xf32> -> vector<8x128xf32>
    %117 = arith.mulf %115, %116 : vector<8x128xf32>
    %cst_30 = arith.constant 2.000000e+00 : f32
    %118 = vector.broadcast %cst_30 : f32 to vector<8x128xf32>
    %119 = arith.subf %118, %117 : vector<8x128xf32>
    %120 = arith.mulf %116, %119 : vector<8x128xf32>
    %121 = arith.mulf %115, %120 : vector<8x128xf32>
    %cst_31 = arith.constant 2.000000e+00 : f32
    %122 = vector.broadcast %cst_31 : f32 to vector<8x128xf32>
    %123 = arith.subf %122, %121 : vector<8x128xf32>
    %124 = arith.mulf %120, %123 : vector<8x128xf32>
    %125 = arith.mulf %105, %124 : vector<8x128xf32>
    %126 = arith.subf %86, %125 : vector<8x128xf32>
    %cst_32 = arith.constant 0.000000e+00 : f32
    %127 = vector.broadcast %cst_32 : f32 to vector<8x128xf32>
    %128 = arith.cmpf ogt, %126, %127 : vector<8x128xf32>
    %129 = arith.select %128, %86, %125 : vector<8x128xi1>, vector<8x128xf32>
    %130 = vector.shape_cast %128 : vector<8x128xi1> to vector<1x8x128xi1>
    %131 = vector.extract_strided_slice %6 {offsets = [0, 0, 0], sizes = [5, 8, 128], strides = [1, 1, 1]} : vector<10x8x128xf32> to vector<5x8x128xf32>
    %132 = vector.extract_strided_slice %6 {offsets = [5, 0, 0], sizes = [5, 8, 128], strides = [1, 1, 1]} : vector<10x8x128xf32> to vector<5x8x128xf32>
    %133 = vector.shape_cast %130 : vector<1x8x128xi1> to vector<1x8x128xi1>
    %134 = vector.broadcast %133 : vector<1x8x128xi1> to vector<5x8x128xi1>
    %135 = arith.select %134, %131, %132 : vector<5x8x128xi1>, vector<5x8x128xf32>
    %136 = vector.extract_strided_slice %135 {offsets = [0, 0, 0], sizes = [4, 8, 128], strides = [1, 1, 1]} : vector<5x8x128xf32> to vector<4x8x128xf32>
    %137 = arith.subf %136, %12 : vector<4x8x128xf32>
    %138 = arith.mulf %137, %137 : vector<4x8x128xf32>
    %cst_33 = arith.constant dense<0.000000e+00> : vector<8x128xf32>
    %139 = vector.multi_reduction <add>, %138, %cst_33 [0] : vector<4x8x128xf32> to vector<8x128xf32>
    %140 = arith.mulf %18, %139 : vector<8x128xf32>
    %141 = vector.extract_strided_slice %135 {offsets = [4, 0, 0], sizes = [1, 8, 128], strides = [1, 1, 1]} : vector<5x8x128xf32> to vector<1x8x128xf32>
    %142 = vector.shape_cast %141 : vector<1x8x128xf32> to vector<8x128xf32>
    %143 = arith.subf %142, %129 : vector<8x128xf32>
    %144 = arith.mulf %143, %143 : vector<8x128xf32>
    %145 = arith.mulf %18, %144 : vector<8x128xf32>
    %c0_34 = arith.constant 0 : index
    %c0_35 = arith.constant 0 : index
    %c0_36 = arith.constant 0 : index
    %c0_37 = arith.constant 0 : index
    %146 = vector.load %arg3[%c0_34, %c0_35, %c0_36, %c0_37] : memref<1x4x8x128xf32, #tpu.memory_space<vmem>>, vector<1x1x8x128xf32>
    %147 = vector.shape_cast %146 : vector<1x1x8x128xf32> to vector<8x128xf32>
    %148 = arith.addf %147, %24 : vector<8x128xf32>
    %c0_38 = arith.constant 0 : index
    %c0_39 = arith.constant 0 : index
    %c0_40 = arith.constant 0 : index
    %c0_41 = arith.constant 0 : index
    %149 = vector.load %arg3[%c0_38, %c0_39, %c0_40, %c0_41] : memref<1x4x8x128xf32, #tpu.memory_space<vmem>>, vector<1x1x8x128xf32>
    %150 = vector.shape_cast %149 : vector<1x1x8x128xf32> to vector<8x128xf32>
    %151 = vector.shape_cast %148 : vector<8x128xf32> to vector<1x1x8x128xf32>
    tpu.vector_store %arg3[%c0_38, %c0_39, %c0_40, %c0_41], %151 {strides = array<i32>} : memref<1x4x8x128xf32, #tpu.memory_space<vmem>>, vector<1x1x8x128xf32>,
    %c0_42 = arith.constant 0 : index
    %c1 = arith.constant 1 : index
    %c0_43 = arith.constant 0 : index
    %c0_44 = arith.constant 0 : index
    %152 = vector.load %arg3[%c0_42, %c1, %c0_43, %c0_44] : memref<1x4x8x128xf32, #tpu.memory_space<vmem>>, vector<1x1x8x128xf32>
    %153 = vector.shape_cast %152 : vector<1x1x8x128xf32> to vector<8x128xf32>
    %154 = arith.addf %153, %33 : vector<8x128xf32>
    %c0_45 = arith.constant 0 : index
    %c1_46 = arith.constant 1 : index
    %c0_47 = arith.constant 0 : index
    %c0_48 = arith.constant 0 : index
    %155 = vector.load %arg3[%c0_45, %c1_46, %c0_47, %c0_48] : memref<1x4x8x128xf32, #tpu.memory_space<vmem>>, vector<1x1x8x128xf32>
    %156 = vector.shape_cast %155 : vector<1x1x8x128xf32> to vector<8x128xf32>
    %157 = vector.shape_cast %154 : vector<8x128xf32> to vector<1x1x8x128xf32>
    tpu.vector_store %arg3[%c0_45, %c1_46, %c0_47, %c0_48], %157 {strides = array<i32>} : memref<1x4x8x128xf32, #tpu.memory_space<vmem>>, vector<1x1x8x128xf32>,
    %c0_49 = arith.constant 0 : index
    %c2 = arith.constant 2 : index
    %c0_50 = arith.constant 0 : index
    %c0_51 = arith.constant 0 : index
    %158 = vector.load %arg3[%c0_49, %c2, %c0_50, %c0_51] : memref<1x4x8x128xf32, #tpu.memory_space<vmem>>, vector<1x1x8x128xf32>
    %159 = vector.shape_cast %158 : vector<1x1x8x128xf32> to vector<8x128xf32>
    %160 = arith.addf %159, %140 : vector<8x128xf32>
    %c0_52 = arith.constant 0 : index
    %c2_53 = arith.constant 2 : index
    %c0_54 = arith.constant 0 : index
    %c0_55 = arith.constant 0 : index
    %161 = vector.load %arg3[%c0_52, %c2_53, %c0_54, %c0_55] : memref<1x4x8x128xf32, #tpu.memory_space<vmem>>, vector<1x1x8x128xf32>
    %162 = vector.shape_cast %161 : vector<1x1x8x128xf32> to vector<8x128xf32>
    %163 = vector.shape_cast %160 : vector<8x128xf32> to vector<1x1x8x128xf32>
    tpu.vector_store %arg3[%c0_52, %c2_53, %c0_54, %c0_55], %163 {strides = array<i32>} : memref<1x4x8x128xf32, #tpu.memory_space<vmem>>, vector<1x1x8x128xf32>,
    %c0_56 = arith.constant 0 : index
    %c3 = arith.constant 3 : index
    %c0_57 = arith.constant 0 : index
    %c0_58 = arith.constant 0 : index
    %164 = vector.load %arg3[%c0_56, %c3, %c0_57, %c0_58] : memref<1x4x8x128xf32, #tpu.memory_space<vmem>>, vector<1x1x8x128xf32>
    %165 = vector.shape_cast %164 : vector<1x1x8x128xf32> to vector<8x128xf32>
    %166 = arith.addf %165, %145 : vector<8x128xf32>
    %c0_59 = arith.constant 0 : index
    %c3_60 = arith.constant 3 : index
    %c0_61 = arith.constant 0 : index
    %c0_62 = arith.constant 0 : index
    %167 = vector.load %arg3[%c0_59, %c3_60, %c0_61, %c0_62] : memref<1x4x8x128xf32, #tpu.memory_space<vmem>>, vector<1x1x8x128xf32>
    %168 = vector.shape_cast %167 : vector<1x1x8x128xf32> to vector<8x128xf32>
    %169 = vector.shape_cast %166 : vector<8x128xf32> to vector<1x1x8x128xf32>
    tpu.vector_store %arg3[%c0_59, %c3_60, %c0_61, %c0_62], %169 {strides = array<i32>} : memref<1x4x8x128xf32, #tpu.memory_space<vmem>>, vector<1x1x8x128xf32>,
    %c1_i32_63 = arith.constant 1 : i32
    return
  }
  func.func @transform_0(%arg0: i32) -> (i32, i32, i32, i32) {
    %c0_i32 = arith.constant 0 : i32
    %c0_i32_0 = arith.constant 0 : i32
    %c0_i32_1 = arith.constant 0 : i32
    %c0_i32_2 = arith.constant 0 : i32
    return %arg0, %c0_i32, %c0_i32_0, %c0_i32_1 : i32, i32, i32, i32
  }
  func.func @transform_1(%arg0: i32) -> (i32, i32, i32, i32) {
    %c0_i32 = arith.constant 0 : i32
    %c0_i32_0 = arith.constant 0 : i32
    %c0_i32_1 = arith.constant 0 : i32
    %c0_i32_2 = arith.constant 0 : i32
    return %arg0, %c0_i32, %c0_i32_0, %c0_i32_1 : i32, i32, i32, i32
  }
  func.func @transform_2(%arg0: i32) -> (i32, i32, i32, i32) {
    %c0_i32 = arith.constant 0 : i32
    %c0_i32_0 = arith.constant 0 : i32
    %c0_i32_1 = arith.constant 0 : i32
    %c0_i32_2 = arith.constant 0 : i32
    return %arg0, %c0_i32, %c0_i32_0, %c0_i32_1 : i32, i32, i32, i32
  }
}

</mosaic_0001>

<llo_original>
// kernel: _yolo_loss_forward.1
$region0: #{_yolo_loss_forward.1}
  #allocation0 [shape = 'u32[]', space=smem, size = 0x4, offset = 0x4, fixed_abs, tag = 'smem constant byte address 0x4 - core index']
  #allocation1 [shape = 'u32[144,128]{1,0:T(1,128)}', space=vmem, size = 0x12000, scoped, tag = 'internal scratch']
  %s0 = inlined_call_operand.vmem [shape: f32[1,30,8,128], index: 0, kind: input, shape index: {}]
  %s1 = inlined_call_operand.vmem [shape: f32[1,25,8,128], index: 1, kind: input, shape index: {}]
  %s2 = inlined_call_operand.vmem [shape: f32[1,4,8,128], index: 2, kind: output, shape index: {}]
  %s3 = sld [smem:[#allocation0]]
  $region18: #{_yolo_loss_forward.1} parent=0
    _
  %s5 = ssub.s32 1, %s3
  %s6 = scalar_select 0, %s5, %s3
  // Predicated region
  $region2: #{_yolo_loss_forward.1} parent=0 // pred_check
    _
  $region3: #{_yolo_loss_forward.1} parent=0 // pred_check_branch
    %8 = sbr.rel (0) target = $region5
  $region4: #{_yolo_loss_forward.1} parent=0 // pred_region
    _
  $region5: #{_yolo_loss_forward.1} parent=0 // pred_fallthru
    _
  // Predicated region
  $region6: #{_yolo_loss_forward.1} parent=0 // pred_check
    _
  $region7: #{_yolo_loss_forward.1} parent=0 // pred_check_branch
    %10 = sbr.rel (0) target = $region9
  $region8: #{_yolo_loss_forward.1} parent=0 // pred_region
    _
  $region9: #{_yolo_loss_forward.1} parent=0 // pred_fallthru
    _
  %11 = vst [vmem:[%s2] sm:$0xff] 0.0
  %12 = vst [vmem:[%s2 + $0x8] sm:$0xff] 0.0
  %13 = vst [vmem:[%s2 + $0x10] sm:$0xff] 0.0
  %14 = vst [vmem:[%s2 + $0x18] sm:$0xff] 0.0
  %v15 = vld [vmem:[%s0] sm:$0xff]
  %v16 = vld [vmem:[%s0 + $0x8] sm:$0xff]
  %v17 = vld [vmem:[%s0 + $0x10] sm:$0xff]
  %v18 = vld [vmem:[%s0 + $0x18] sm:$0xff]
  %v19 = vld [vmem:[%s0 + $0x20] sm:$0xff]
  %v20 = vld [vmem:[%s0 + $0x28] sm:$0xff]
  %v21 = vld [vmem:[%s0 + $0x30] sm:$0xff]
  %v22 = vld [vmem:[%s0 + $0x38] sm:$0xff]
  %v23 = vld [vmem:[%s0 + $0x40] sm:$0xff]
  %v24 = vld [vmem:[%s0 + $0x48] sm:$0xff]
  %s25 = scalar_lea.vmem %s0, 80
  %v26 = vld [vmem:[%s25] sm:$0xff]
  %v27 = vld [vmem:[%s25 + $0x8] sm:$0xff]
  %v28 = vld [vmem:[%s25 + $0x10] sm:$0xff]
  %v29 = vld [vmem:[%s25 + $0x18] sm:$0xff]
  %v30 = vld [vmem:[%s25 + $0x20] sm:$0xff]
  %v31 = vld [vmem:[%s25 + $0x28] sm:$0xff]
  %v32 = vld [vmem:[%s25 + $0x30] sm:$0xff]
  %v33 = vld [vmem:[%s25 + $0x38] sm:$0xff]
  %v34 = vld [vmem:[%s25 + $0x40] sm:$0xff]
  %v35 = vld [vmem:[%s25 + $0x48] sm:$0xff]
  %v36 = vld [vmem:[%s25 + $0x50] sm:$0xff]
  %v37 = vld [vmem:[%s25 + $0x58] sm:$0xff]
  %v38 = vld [vmem:[%s25 + $0x60] sm:$0xff]
  %v39 = vld [vmem:[%s25 + $0x68] sm:$0xff]
  %v40 = vld [vmem:[%s25 + $0x70] sm:$0xff]
  %v41 = vld [vmem:[%s25 + $0x78] sm:$0xff]
  %v42 = vld [vmem:[%s25 + $0x80] sm:$0xff]
  %v43 = vld [vmem:[%s25 + $0x88] sm:$0xff]
  %v44 = vld [vmem:[%s25 + $0x90] sm:$0xff]
  %v45 = vld [vmem:[%s25 + $0x98] sm:$0xff]
  %v46 = vld [vmem:[%s1] sm:$0xff]
  %v47 = vld [vmem:[%s1 + $0x8] sm:$0xff]
  %v48 = vld [vmem:[%s1 + $0x10] sm:$0xff]
  %v49 = vld [vmem:[%s1 + $0x18] sm:$0xff]
  %s50 = scalar_lea.vmem %s1, 32
  %v51 = vld [vmem:[%s50] sm:$0xff]
  %v52 = vld [vmem:[%s50 + $0x8] sm:$0xff]
  %v53 = vld [vmem:[%s50 + $0x10] sm:$0xff]
  %v54 = vld [vmem:[%s50 + $0x18] sm:$0xff]
  %v55 = vld [vmem:[%s50 + $0x20] sm:$0xff]
  %v56 = vld [vmem:[%s50 + $0x28] sm:$0xff]
  %v57 = vld [vmem:[%s50 + $0x30] sm:$0xff]
  %v58 = vld [vmem:[%s50 + $0x38] sm:$0xff]
  %v59 = vld [vmem:[%s50 + $0x40] sm:$0xff]
  %v60 = vld [vmem:[%s50 + $0x48] sm:$0xff]
  %v61 = vld [vmem:[%s50 + $0x50] sm:$0xff]
  %v62 = vld [vmem:[%s50 + $0x58] sm:$0xff]
  %v63 = vld [vmem:[%s50 + $0x60] sm:$0xff]
  %v64 = vld [vmem:[%s50 + $0x68] sm:$0xff]
  %v65 = vld [vmem:[%s50 + $0x70] sm:$0xff]
  %v66 = vld [vmem:[%s50 + $0x78] sm:$0xff]
  %v67 = vld [vmem:[%s50 + $0x80] sm:$0xff]
  %v68 = vld [vmem:[%s50 + $0x88] sm:$0xff]
  %v69 = vld [vmem:[%s50 + $0x90] sm:$0xff]
  %v70 = vld [vmem:[%s50 + $0x98] sm:$0xff]
  %s71 = scalar_lea.vmem %s1, 192
  %v72 = vld [vmem:[%s71] sm:$0xff]
  %v73 = vsub.f32 1.0, %v72
  %v74 = vsub.f32 %v26, %v51
  %v75 = vsub.f32 %v27, %v52
  %v76 = vsub.f32 %v28, %v53
  %v77 = vsub.f32 %v29, %v54
  %v78 = vsub.f32 %v30, %v55
  %v79 = vsub.f32 %v31, %v56
  %v80 = vsub.f32 %v32, %v57
  %v81 = vsub.f32 %v33, %v58
  %v82 = vsub.f32 %v34, %v59
  %v83 = vsub.f32 %v35, %v60
  %v84 = vsub.f32 %v36, %v61
  %v85 = vsub.f32 %v37, %v62
  %v86 = vsub.f32 %v38, %v63
  %v87 = vsub.f32 %v39, %v64
  %v88 = vsub.f32 %v40, %v65
  %v89 = vsub.f32 %v41, %v66
  %v90 = vsub.f32 %v42, %v67
  %v91 = vsub.f32 %v43, %v68
  %v92 = vsub.f32 %v44, %v69
  %v93 = vsub.f32 %v45, %v70
  %v94 = vmul.f32 %v74, %v74
  %v95 = vmul.f32 %v75, %v75
  %v96 = vmul.f32 %v76, %v76
  %v97 = vmul.f32 %v77, %v77
  %v98 = vmul.f32 %v78, %v78
  %v99 = vmul.f32 %v79, %v79
  %v100 = vmul.f32 %v80, %v80
  %v101 = vmul.f32 %v81, %v81
  %v102 = vmul.f32 %v82, %v82
  %v103 = vmul.f32 %v83, %v83
  %v104 = vmul.f32 %v84, %v84
  %v105 = vmul.f32 %v85, %v85
  %v106 = vmul.f32 %v86, %v86
  %v107 = vmul.f32 %v87, %v87
  %v108 = vmul.f32 %v88, %v88
  %v109 = vmul.f32 %v89, %v89
  %v110 = vmul.f32 %v90, %v90
  %v111 = vmul.f32 %v91, %v91
  %v112 = vmul.f32 %v92, %v92
  %v113 = vmul.f32 %v93, %v93
  %v114 = vadd.f32 %v94, %v95
  %v115 = vadd.f32 %v114, %v96
  %v116 = vadd.f32 %v115, %v97
  %v117 = vadd.f32 %v116, %v98
  %v118 = vadd.f32 %v117, %v99
  %v119 = vadd.f32 %v118, %v100
  %v120 = vadd.f32 %v119, %v101
  %v121 = vadd.f32 %v120, %v102
  %v122 = vadd.f32 %v121, %v103
  %v123 = vadd.f32 %v122, %v104
  %v124 = vadd.f32 %v123, %v105
  %v125 = vadd.f32 %v124, %v106
  %v126 = vadd.f32 %v125, %v107
  %v127 = vadd.f32 %v126, %v108
  %v128 = vadd.f32 %v127, %v109
  %v129 = vadd.f32 %v128, %v110
  %v130 = vadd.f32 %v129, %v111
  %v131 = vadd.f32 %v130, %v112
  %v132 = vadd.f32 %v131, %v113
  %v133 = vmul.f32 %v132, %v72
  %v134 = vmul.f32 %v19, %v73
  %v135 = vmul.f32 %v24, %v73
  %v136 = vmul.f32 %v134, %v134
  %v137 = vmul.f32 %v135, %v135
  %v138 = vadd.f32 %v136, %v137
  %v139 = vmul.f32 %v46, 0.125
  %v140 = vmul.f32 %v47, 0.125
  %v141 = vmul.f32 %v48, 0.5
  %v142 = vmul.f32 %v49, 0.5
  %v143 = vsub.f32 %v139, %v141
  %v144 = vsub.f32 %v140, %v142
  %v145 = vadd.f32 %v139, %v141
  %v146 = vadd.f32 %v140, %v142
  %v147 = vsub.f32 %v145, %v143
  %v148 = vsub.f32 %v146, %v144
  %v149 = vmul.f32 %v147, %v148
  %v150 = vmul.f32 %v15, 0.125
  %v151 = vmul.f32 %v16, 0.125
  %v152 = vmul.f32 %v17, 0.5
  %v153 = vmul.f32 %v18, 0.5
  %v154 = vsub.f32 %v150, %v152
  %v155 = vsub.f32 %v151, %v153
  %v156 = vadd.f32 %v150, %v152
  %v157 = vadd.f32 %v151, %v153
  %v158 = vmax.f32 %v154, %v143
  %v159 = vmax.f32 %v155, %v144
  %v160 = vmin.f32 %v156, %v145
  %v161 = vmin.f32 %v157, %v146
  %v162 = vsub.f32 %v160, %v158
  %v163 = vsub.f32 %v161, %v159
  %v164 = vmax.f32 %v162, 0.0
  %v165 = vmax.f32 %v163, 0.0
  %v166 = vmul.f32 %v164, %v165
  %v167 = vsub.f32 %v156, %v154
  %v168 = vsub.f32 %v157, %v155
  %v169 = vmul.f32 %v167, %v168
  %v170 = vadd.f32 %v169, %v149
  %v171 = vsub.f32 %v170, %v166
  %v172 = vadd.f32 %v171, 1e-12
  %v173 = vrcp.pop %v172
  %v174 = vmul.f32 %v172, %v173
  %v175 = vsub.f32 2.0, %v174
  %v176 = vmul.f32 %v173, %v175
  %v177 = vmul.f32 %v172, %v176
  %v178 = vsub.f32 2.0, %v177
  %v179 = vmul.f32 %v176, %v178
  %v180 = vmul.f32 %v166, %v179
  %v181 = vmul.f32 %v20, 0.125
  %v182 = vmul.f32 %v21, 0.125
  %v183 = vmul.f32 %v22, 0.5
  %v184 = vmul.f32 %v23, 0.5
  %v185 = vsub.f32 %v181, %v183
  %v186 = vsub.f32 %v182, %v184
  %v187 = vadd.f32 %v181, %v183
  %v188 = vadd.f32 %v182, %v184
  %v189 = vmax.f32 %v185, %v143
  %v190 = vmax.f32 %v186, %v144
  %v191 = vmin.f32 %v187, %v145
  %v192 = vmin.f32 %v188, %v146
  %v193 = vsub.f32 %v191, %v189
  %v194 = vsub.f32 %v192, %v190
  %v195 = vmax.f32 %v193, 0.0
  %v196 = vmax.f32 %v194, 0.0
  %v197 = vmul.f32 %v195, %v196
  %v198 = vsub.f32 %v187, %v185
  %v199 = vsub.f32 %v188, %v186
  %v200 = vmul.f32 %v198, %v199
  %v201 = vadd.f32 %v200, %v149
  %v202 = vsub.f32 %v201, %v197
  %v203 = vadd.f32 %v202, 1e-12
  %v204 = vrcp.pop %v203
  %v205 = vmul.f32 %v203, %v204
  %v206 = vsub.f32 2.0, %v205
  %v207 = vmul.f32 %v204, %v206
  %v208 = vmul.f32 %v203, %v207
  %v209 = vsub.f32 2.0, %v208
  %v210 = vmul.f32 %v207, %v209
  %v211 = vmul.f32 %v197, %v210
  %v212 = vsub.f32 %v180, %v211
  %vm213 = vcmp.gt.f32.partialorder %v212, 0.0
  %v214 = vsel %vm213, %v180, %v211
  %v215 = vsel %vm213, 1, 0
  %vm216 = vcmp.eq.s32.totalorder %v215, 1
  %v217 = vsel %vm216, %v15, %v20
  %v218 = vsel %vm216, %v16, %v21
  %v219 = vsel %vm216, %v17, %v22
  %v220 = vsel %vm216, %v18, %v23
  %v221 = vsel %vm216, %v19, %v24
  %v222 = vsub.f32 %v217, %v46
  %v223 = vsub.f32 %v218, %v47
  %v224 = vsub.f32 %v219, %v48
  %v225 = vsub.f32 %v220, %v49
  %v226 = vmul.f32 %v222, %v222
  %v227 = vmul.f32 %v223, %v223
  %v228 = vmul.f32 %v224, %v224
  %v229 = vmul.f32 %v225, %v225
  %v230 = vadd.f32 %v226, %v227
  %v231 = vadd.f32 %v230, %v228
  %v232 = vadd.f32 %v231, %v229
  %v233 = vmul.f32 %v72, %v232
  %v234 = vsub.f32 %v221, %v214
  %v235 = vmul.f32 %v234, %v234
  %v236 = vmul.f32 %v72, %v235
  %v237 = vld [vmem:[%s2] sm:$0xff]
  %v238 = vadd.f32 %v237, %v133
  %239 = vst [vmem:[%s2] sm:$0xff] %v238
  %s240 = scalar_lea.vmem %s2, 8
  %v241 = vld [vmem:[%s240] sm:$0xff]
  %v242 = vadd.f32 %v241, %v138
  %243 = vst [vmem:[%s240] sm:$0xff] %v242
  %s244 = scalar_lea.vmem %s2, 16
  %v245 = vld [vmem:[%s244] sm:$0xff]
  %v246 = vadd.f32 %v245, %v233
  %247 = vst [vmem:[%s244] sm:$0xff] %v246
  %s248 = scalar_lea.vmem %s2, 24
  %v249 = vld [vmem:[%s248] sm:$0xff]
  %v250 = vadd.f32 %v249, %v236
  %251 = vst [vmem:[%s248] sm:$0xff] %v250
  // Predicated region
  $region10: #{_yolo_loss_forward.1} parent=0 // pred_check
    _
  $region11: #{_yolo_loss_forward.1} parent=0 // pred_check_branch
    %253 = sbr.rel (0) target = $region13
  $region12: #{_yolo_loss_forward.1} parent=0 // pred_region
    _
  $region13: #{_yolo_loss_forward.1} parent=0 // pred_fallthru
    _
  // Predicated region
  $region14: #{_yolo_loss_forward.1} parent=0 // pred_check
    _
  $region15: #{_yolo_loss_forward.1} parent=0 // pred_check_branch
    %255 = sbr.rel (0) target = $region17
  $region16: #{_yolo_loss_forward.1} parent=0 // pred_region
    _
  $region17: #{_yolo_loss_forward.1} parent=0 // pred_fallthru
    _

</llo_original>
